<compile_context>
chip_gen: v6e
topology: v6e:2x2x1
jax: 0.10.0
libtpu: 0.0.40
codegen_flags: <defaults>
</compile_context>

<pallas_src>
import jax
import jax.numpy as jnp
from jax.experimental import pallas as pl
from jax.experimental.pallas import tpu as pltpu


def _cat_tanh_kernel(x_ref, o_ref):
    # x_ref: (block_b, C)   o_ref: (block_b, 2, C)
    t = jnp.tanh(x_ref[...]).astype(o_ref.dtype)
    o_ref[:, 0, :] = t
    o_ref[:, 1, :] = t


def cat_tanh(x: jax.Array) -> jax.Array:
    """Equivalent of torch: tanh(cat([x, x], dim=1)) for x of shape (B, S, D)."""
    b, s, d = x.shape
    c = s * d

    # Flatten per-batch slab so the kernel sees a lane-dense last dim.
    x2 = x.reshape(b, c)

    # Batch tiling: whole array when small (full-extent blocks are always
    # legal); switch to sublane-aligned tiles when the batch dim grows.
    if b <= 1024:
        block_b = b
    else:
        block_b = 512  # multiple of 8 sublanes; in_tile + 2x out_tile stays well under VMEM.
    grid = (pl.cdiv(b, block_b),)

    out = pl.pallas_call(
        _cat_tanh_kernel,
        out_shape=jax.ShapeDtypeStruct((b, 2, c), x.dtype),
        grid=grid,
        in_specs=[pl.BlockSpec((block_b, c), lambda i: (i, 0))],
        out_specs=pl.BlockSpec((block_b, 2, c), lambda i: (i, 0, 0)),
        compiler_params=pltpu.CompilerParams(
            dimension_semantics=("parallel",),
        ),
    )(x2)

    # Contiguous (free) reshape back to the PyTorch output layout (B, 2*S, D).
    return out.reshape(b, 2 * s, d)


if __name__ == "__main__":
    key = jax.random.PRNGKey(0)
    x = jax.random.normal(key, (2, 3, 4), dtype=jnp.float32)

    out = cat_tanh(x)
    jax.block_until_ready(out)

    # Reference: plain-JAX semantics of the PyTorch module.
    ref = jnp.tanh(jnp.concatenate([x, x], axis=1))
    assert out.shape == (2, 6, 4), out.shape
    assert jnp.allclose(out, ref, atol=1e-6), "mismatch vs reference"

    print("KERNEL_OK")
</pallas_src>

<mosaic_0001>
module attributes {stable_mosaic.version = 11 : i64} {
  func.func @_cat_tanh_kernel(%arg0: i32, %arg1: memref<2x12xf32, #tpu.memory_space<vmem>>, %arg2: memref<2x2x12xf32, #tpu.memory_space<vmem>>) attributes {dimension_semantics = [#tpu.dimension_semantics<parallel>], iteration_bounds = array<i64: 1>, scalar_prefetch = 0 : i64, scratch_operands = 0 : i64, tpu.core_type = #tpu.core_type<tc>, window_params = [{transform_indices = @transform_0, window_bounds = array<i64: 2, 12>}, {transform_indices = @transform_1, window_bounds = array<i64: 2, 2, 12>}]} {
    %c0 = arith.constant 0 : index
    %c0_0 = arith.constant 0 : index
    %0 = vector.load %arg1[%c0, %c0_0] : memref<2x12xf32, #tpu.memory_space<vmem>>, vector<2x12xf32>
    %1 = math.tanh %0 : vector<2x12xf32>
    %c0_1 = arith.constant 0 : index
    %c0_2 = arith.constant 0 : index
    %c0_3 = arith.constant 0 : index
    %2 = vector.load %arg2[%c0_1, %c0_2, %c0_3] : memref<2x2x12xf32, #tpu.memory_space<vmem>>, vector<2x1x12xf32>
    %3 = vector.shape_cast %2 : vector<2x1x12xf32> to vector<2x12xf32>
    %4 = vector.shape_cast %1 : vector<2x12xf32> to vector<2x1x12xf32>
    tpu.vector_store %arg2[%c0_1, %c0_2, %c0_3], %4 {strides = array<i32>} : memref<2x2x12xf32, #tpu.memory_space<vmem>>, vector<2x1x12xf32>,
    %c0_4 = arith.constant 0 : index
    %c1 = arith.constant 1 : index
    %c0_5 = arith.constant 0 : index
    %5 = vector.load %arg2[%c0_4, %c1, %c0_5] : memref<2x2x12xf32, #tpu.memory_space<vmem>>, vector<2x1x12xf32>
    %6 = vector.shape_cast %5 : vector<2x1x12xf32> to vector<2x12xf32>
    %7 = vector.shape_cast %1 : vector<2x12xf32> to vector<2x1x12xf32>
    tpu.vector_store %arg2[%c0_4, %c1, %c0_5], %7 {strides = array<i32>} : memref<2x2x12xf32, #tpu.memory_space<vmem>>, vector<2x1x12xf32>,
    return
  }
  func.func @transform_0(%arg0: i32) -> (i32, i32) {
    %c0_i32 = arith.constant 0 : i32
    %c0_i32_0 = arith.constant 0 : i32
    return %arg0, %c0_i32 : i32, i32
  }
  func.func @transform_1(%arg0: i32) -> (i32, i32, i32) {
    %c0_i32 = arith.constant 0 : i32
    %c0_i32_0 = arith.constant 0 : i32
    %c0_i32_1 = arith.constant 0 : i32
    return %arg0, %c0_i32, %c0_i32_0 : i32, i32, i32
  }
}

</mosaic_0001>

<llo_original>
// kernel: tpu_custom_call.1
$region0: #{tpu_custom_call.1}
  #allocation0 [shape = 'u32[]', space=smem, size = 0x4, offset = 0x4, fixed_abs, tag = 'smem constant byte address 0x4 - core index']
  #allocation1 [shape = 'u32[144,128]{1,0:T(1,128)}', space=vmem, size = 0x12000, scoped, tag = 'internal scratch']
  %s0 = inlined_call_operand.hbm [shape: f32[2,12], index: 0, kind: input, shape index: {}]
  %s1 = inlined_call_operand.hbm [shape: f32[2,2,12], index: 1, kind: output, shape index: {}]
  %s2 = sld [smem:[#allocation0]]
  $region18: #{tpu_custom_call.1} parent=0
    _
  %s4 = ssub.s32 1, %s2
  %s5 = scalar_select 0, %s4, %s2
  $region1: #{tpu_custom_call.1} parent=0
    #allocation2 [shape = 'u8[1024]{0}', space=vmem, size = 0x400, scoped, tag = 'input window, operand 0, single buffered']
    #allocation3 [shape = 's32[1]{0}', space=sflag, size = 0x4, scoped, tag = 'scoped memory for tpu_custom_call.1']
    #allocation4 [shape = 's32[1]{0}', space=sflag, size = 0x4, scoped, tag = 'scoped memory for tpu_custom_call.1']
    #allocation5 [shape = 'u8[2048]{0}', space=vmem, size = 0x800, scoped, tag = 'output window, operand 0, single buffered']
    %6 = vsyncpa [#allocation3], 0
    %7 = vsyncpa [#allocation4], 0
    // Predicated region
    $region2: #{tpu_custom_call.1} parent=1 // pred_check
      _
    $region3: #{tpu_custom_call.1} parent=1 // pred_check_branch
      %9 = sbr.rel (0) target = $region5
    $region4: #{tpu_custom_call.1} parent=1 // pred_region
      %s11 = ssub.s32 32, 32
      %12 = vsyncadd [#allocation3], %s11
      %s14 = sshll.u32 [#allocation2], 4
      %s15 = int_to_ptr.vmem [resolvable:$true] %s14
      %17 = dma.hbm_to_vmem [thread:$0]  %s0, 32, %s15, [#allocation3]
    $region5: #{tpu_custom_call.1} parent=1 // pred_fallthru
      _
    // Predicated region
    $region6: #{tpu_custom_call.1} parent=1 // pred_check
      _
    $region7: #{tpu_custom_call.1} parent=1 // pred_check_branch
      %19 = sbr.rel (0) target = $region9
    $region8: #{tpu_custom_call.1} parent=1 // pred_region
      %20 = dma.done [#allocation3], 32
    $region9: #{tpu_custom_call.1} parent=1 // pred_fallthru
      _
    %v21 = vld [vmem:[#allocation2] sm:$0x3]
    %v22 = vtanh.pop %v21
    %v25 = vunpack.c.l.s4 1966171168
    %v26 = vunpack.c.0.s8 %v25
    %v27 = vlaneseq
    %v28 = vshrl.u32 %v27, 7
    %v29 = vsub.s32 %v26, %v28
    %v30 = vrot.slane %v22, %v29
    %v31 = vcombine.high %v30, %v30
    %v33 = vunpack.c.l.s4 1966171168
    %v34 = vunpack.c.0.s8 %v33
    %v35 = vlaneseq
    %v36 = vshrl.u32 %v35, 7
    %v37 = vsub.s32 %v34, %v36
    %v38 = vrot.slane %v30, %v37
    %v40 = vunpack.c.l.s4 1966171168
    %v41 = vunpack.c.0.s8 %v40
    %v42 = vlaneseq
    %v43 = vshrl.u32 %v42, 7
    %v44 = vsub.s32 %v41, %v43
    %v45 = vrot.slane %v31, %v44
    %vm48 = vcmask 90112
    %49 = vst.msk [vmem:[#allocation5] sm:$0x1] %vm48, %v38
    %50 = vst.msk [vmem:[#allocation5 + $0x2] sm:$0x1] %vm48, %v45
    %51 = vst.msk [vmem:[#allocation5 + $0x1] sm:$0x1] %vm48, %v38
    %52 = vst.msk [vmem:[#allocation5 + $0x3] sm:$0x1] %vm48, %v45
    // Predicated region
    $region10: #{tpu_custom_call.1} parent=1 // pred_check
      _
    $region11: #{tpu_custom_call.1} parent=1 // pred_check_branch
      %54 = sbr.rel (0) target = $region13
    $region12: #{tpu_custom_call.1} parent=1 // pred_region
      %s56 = ssub.s32 64, 64
      %57 = vsyncadd [#allocation4], %s56
      %s58 = sshll.u32 [#allocation5], 4
      %s59 = int_to_ptr.vmem [resolvable:$true] %s58
      %64 = dma.vmem_to_hbm [thread:$0]  %s59, 64, %s1, [#allocation4], 32, 32, 2
    $region13: #{tpu_custom_call.1} parent=1 // pred_fallthru
      _
    // Predicated region
    $region14: #{tpu_custom_call.1} parent=1 // pred_check
      _
    $region15: #{tpu_custom_call.1} parent=1 // pred_check_branch
      %66 = sbr.rel (0) target = $region17
    $region16: #{tpu_custom_call.1} parent=1 // pred_region
      %67 = dma.done [#allocation4], 64
    $region17: #{tpu_custom_call.1} parent=1 // pred_fallthru
      _
    %68 = vsyncpa [#allocation3], 1
    %69 = vsyncpa [#allocation4], 1

</llo_original>
